<compile_context>
chip_gen: v5e
topology: v5e:2x2
jax: 0.10.0
libtpu: 0.0.40
codegen_flags: <defaults>
</compile_context>

<pallas_src>
import math
from functools import partial

import jax
import jax.numpy as jnp
from jax.experimental import pallas as pl
from jax.experimental.pallas import tpu as pltpu  # noqa: F401

_EPS = 1e-12  # guards all-zero rows in the cosine normalization


def _l2_normalize(x):
    return x * jax.lax.rsqrt(jnp.sum(x * x, axis=-1, keepdims=True) + _EPS)


def _softmax_last(s):
    s = s - jnp.max(s, axis=-1, keepdims=True)
    e = jnp.exp(s)
    return e * pl.reciprocal(jnp.sum(e, axis=-1, keepdims=True), approx=True)


# ----------------------------- stage 1 (fused) ------------------------------

def _stage1_kernel(T1, xin_ref, xh_ref, wq_ref, bq_ref, wk_ref, bk_ref,
                   feat_total_ref, score_ref):
    """fq/fk projections + cosine-sim softmax score propagation.

    xin:  (bs, T1+T2, F)  = cat([feat_conf_nor, feat_conf_abn], dim=1)
    xh:   (bs, Th, F)     = feat_hard
    feat_total: (bs, T1+T2+Th, F) = cat([fq(xin), fk(xh)], dim=1)
    score:      (bs, Th, 1)       = new_score_hard (squeezed in the wrapper)
    """
    bs, n_in, Fd = xin_ref.shape
    Th = xh_ref.shape[1]

    # weights / biases loaded once (hoisted out of the batch loop)
    wq = wq_ref[...].astype(jnp.bfloat16)
    wk = wk_ref[...].astype(jnp.bfloat16)
    bq = bq_ref[...]
    bk = bk_ref[...]

    # mask selecting the "confident abnormal" columns (pseudo-label score == 1)
    col = jax.lax.broadcasted_iota(jnp.int32, (Th, n_in), 1)
    abn_mask = (col >= T1).astype(jnp.float32)

    # bs is tiny (2): a static unrolled loop keeps every op a plain 2-D
    # matmul / reduce (no relayout-heavy reshapes), all inside one launch.
    for b in range(bs):
        x_in = xin_ref[b]                                      # (n_in, Fd)
        x_h = xh_ref[b]                                        # (Th, Fd)

        feat = jnp.dot(x_in.astype(jnp.bfloat16), wq,
                       preferred_element_type=jnp.float32) + bq
        feat_h = jnp.dot(x_h.astype(jnp.bfloat16), wk,
                         preferred_element_type=jnp.float32) + bk

        # sim = softmax(cos_sim(feat_h, feat))            -> (Th, n_in)
        sim = _softmax_last(
            jnp.einsum("qd,kd->qk",
                       _l2_normalize(feat_h).astype(jnp.bfloat16),
                       _l2_normalize(feat).astype(jnp.bfloat16),
                       preferred_element_type=jnp.float32))

        # new_score_hard = sim @ [0..0, 1..1]^T == masked row-sum (VPU/XLU)
        score_ref[b, :, :] = jnp.sum(sim * abn_mask, axis=-1, keepdims=True)

        # feat_total written directly -> no HBM concat between kernels
        feat_total_ref[b, :n_in, :] = feat
        feat_total_ref[b, n_in:, :] = feat_h


def _stage1(feat_in, feat_hard, wq_t, bq, wk_t, bk, T1):
    bs, n_in, Fd = feat_in.shape
    Th = feat_hard.shape[1]
    feat_total, score = pl.pallas_call(
        partial(_stage1_kernel, T1),
        out_shape=(
            jax.ShapeDtypeStruct((bs, n_in + Th, Fd), jnp.float32),
            jax.ShapeDtypeStruct((bs, Th, 1), jnp.float32),
        ),
    )(feat_in, feat_hard, wq_t, bq, wk_t, bk)
    return feat_total, score[..., 0]


# ----------------------------- stage 2 (fused) ------------------------------

def _self_cos_attn(x):
    # a == b == v: normalize once, reuse for both dot operands and the values.
    xn = _l2_normalize(x).astype(jnp.bfloat16)
    sim = _softmax_last(
        jnp.einsum("bqd,bkd->bqk", xn, xn, preferred_element_type=jnp.float32))
    return jnp.einsum("bqk,bkd->bqd", sim.astype(jnp.bfloat16),
                      x.astype(jnp.bfloat16),
                      preferred_element_type=jnp.float32)


def _stage2_kernel(x1_ref, x2_ref, x3_ref, o1_ref, o2_ref, o3_ref):
    # Three independent self cosine-attention blocks in a single launch.
    o1_ref[...] = _self_cos_attn(x1_ref[...])
    o2_ref[...] = _self_cos_attn(x2_ref[...])
    o3_ref[...] = _self_cos_attn(x3_ref[...])


def _stage2(x1, x2, x3):
    return pl.pallas_call(
        _stage2_kernel,
        out_shape=tuple(jax.ShapeDtypeStruct(x.shape, jnp.float32)
                        for x in (x1, x2, x3)),
    )(x1, x2, x3)


# ------------------------------- LPN forward --------------------------------

def init_lpn_params(key, feature_dim):
    k1, k2, k3, k4 = jax.random.split(key, 4)
    bound = 1.0 / math.sqrt(feature_dim)
    # Linear weights stored already transposed: y = x @ W^T + b
    return {
        "fq_w_t": jax.random.uniform(k1, (feature_dim, feature_dim),
                                     jnp.float32, -bound, bound),
        "fq_b": jax.random.uniform(k2, (1, feature_dim), jnp.float32, -bound, bound),
        "fk_w_t": jax.random.uniform(k3, (feature_dim, feature_dim),
                                     jnp.float32, -bound, bound),
        "fk_b": jax.random.uniform(k4, (1, feature_dim), jnp.float32, -bound, bound),
    }


def lpn_forward(params,
                nor_feat_conf_nor, feat_conf_nor, score_conf_nor,
                feat_conf_abn, score_conf_abn, feat_hard, score_hard,
                abn_idx_conf_nor, abn_idx_conf_abn, abn_idx_hard):
    bs, T, F_len = nor_feat_conf_nor.shape
    T1 = feat_conf_nor.shape[1]
    T2 = feat_conf_abn.shape[1]

    # matches torch.cat([feat_conf_nor, feat_conf_abn], dim=1) (tiny, one-off)
    feat_in = jnp.concatenate([feat_conf_nor, feat_conf_abn], axis=1)

    # fused projections + score-propagation kernel
    feat_total, new_score_hard = _stage1(
        feat_in, feat_hard, params["fq_w_t"], params["fq_b"],
        params["fk_w_t"], params["fk_b"], T1)

    # pseudo-label scores exactly as in the reference
    score = jnp.concatenate(
        [jnp.zeros((bs, T1), jnp.float32), jnp.ones((bs, T2), jnp.float32)], axis=1)
    score_total = jnp.concatenate([score, new_score_hard], axis=1)

    nor_topK_total, nor_topK = 5, 3
    abn_topK_total, abn_topK = 5, 3

    # TODO(synk): small-k top-k / gather kept in XLA (no clean Pallas equivalent).
    _, idx_nor = jax.lax.top_k(-new_score_hard, nor_topK)
    score_topK_nor = jnp.take_along_axis(new_score_hard, idx_nor, axis=1)
    _, idx_nor_total = jax.lax.top_k(-score_total, nor_topK_total)
    feat_topK_nor = jnp.take_along_axis(feat_total, idx_nor_total[..., None], axis=1)

    _, idx_abn = jax.lax.top_k(new_score_hard, abn_topK)
    score_topK_abn = jnp.take_along_axis(new_score_hard, idx_abn, axis=1)
    _, idx_abn_total = jax.lax.top_k(score_total, abn_topK_total)
    feat_topK_abn = jnp.take_along_axis(feat_total, idx_abn_total[..., None], axis=1)

    # fused self cosine-sim attention blocks
    nor_new_feat_nor, new_feat_nor, new_feat_abn = _stage2(
        nor_feat_conf_nor, feat_topK_nor, feat_topK_abn)

    return (new_score_hard, score_topK_nor, score_topK_abn,
            nor_new_feat_nor, new_feat_nor, new_feat_abn)


# ----------------------------------- main ------------------------------------

if __name__ == "__main__":
    key = jax.random.PRNGKey(0)
    bs, T, F_len = 2, 8, 32      # feature_dim = 32
    T1, T2, Th = 4, 4, 6         # conf-normal / conf-abnormal / hard segments

    keys = jax.random.split(key, 12)
    params = init_lpn_params(keys[0], F_len)

    nor_feat_conf_nor = jax.random.normal(keys[1], (bs, T, F_len), jnp.float32)
    feat_conf_nor     = jax.random.normal(keys[2], (bs, T1, F_len), jnp.float32)
    score_conf_nor    = jax.random.uniform(keys[3], (bs, T1), jnp.float32)
    feat_conf_abn     = jax.random.normal(keys[4], (bs, T2, F_len), jnp.float32)
    score_conf_abn    = jax.random.uniform(keys[5], (bs, T2), jnp.float32)
    feat_hard         = jax.random.normal(keys[6], (bs, Th, F_len), jnp.float32)
    score_hard        = jax.random.uniform(keys[7], (bs, Th), jnp.float32)
    abn_idx_conf_nor  = jax.random.uniform(keys[8], (bs, T1), jnp.float32, 0.0, 32.0)
    abn_idx_conf_abn  = jax.random.uniform(keys[9], (bs, T2), jnp.float32, 0.0, 32.0)
    abn_idx_hard      = jax.random.uniform(keys[10], (bs, Th), jnp.float32, 0.0, 32.0)

    fwd = jax.jit(lpn_forward)
    outs = fwd(params,
               nor_feat_conf_nor, feat_conf_nor, score_conf_nor,
               feat_conf_abn, score_conf_abn, feat_hard, score_hard,
               abn_idx_conf_nor, abn_idx_conf_abn, abn_idx_hard)
    outs = jax.block_until_ready(outs)

    # light sanity checks on shapes and values
    assert outs[0].shape == (bs, Th)
    assert outs[1].shape == (bs, 3) and outs[2].shape == (bs, 3)
    assert outs[3].shape == (bs, T, F_len)
    assert outs[4].shape == (bs, 5, F_len) and outs[5].shape == (bs, 5, F_len)
    assert bool(jnp.all(jnp.isfinite(outs[0])))
    # softmax-propagated scores lie in [0, 1]
    assert bool(jnp.all((outs[0] >= -1e-3) & (outs[0] <= 1.0 + 1e-3)))

    print("KERNEL_OK")
</pallas_src>

<mosaic_0001>
module attributes {stable_mosaic.version = 11 : i64} {
  func.func @_stage1_kernel(%arg0: memref<2x8x32xf32, #tpu.memory_space<vmem>>, %arg1: memref<2x6x32xf32, #tpu.memory_space<vmem>>, %arg2: memref<32x32xf32, #tpu.memory_space<vmem>>, %arg3: memref<1x32xf32, #tpu.memory_space<vmem>>, %arg4: memref<32x32xf32, #tpu.memory_space<vmem>>, %arg5: memref<1x32xf32, #tpu.memory_space<vmem>>, %arg6: memref<2x14x32xf32, #tpu.memory_space<vmem>>, %arg7: memref<2x6x1xf32, #tpu.memory_space<vmem>>) attributes {dimension_semantics = [], scalar_prefetch = 0 : i64, scratch_operands = 0 : i64, tpu.core_type = #tpu.core_type<tc>} {
    %c0 = arith.constant 0 : index
    %c0_0 = arith.constant 0 : index
    %0 = vector.load %arg2[%c0, %c0_0] : memref<32x32xf32, #tpu.memory_space<vmem>>, vector<32x32xf32>
    %1 = arith.truncf %0 : vector<32x32xf32> to vector<32x32xbf16>
    %c0_1 = arith.constant 0 : index
    %c0_2 = arith.constant 0 : index
    %2 = vector.load %arg4[%c0_1, %c0_2] : memref<32x32xf32, #tpu.memory_space<vmem>>, vector<32x32xf32>
    %3 = arith.truncf %2 : vector<32x32xf32> to vector<32x32xbf16>
    %c0_3 = arith.constant 0 : index
    %c0_4 = arith.constant 0 : index
    %4 = vector.load %arg3[%c0_3, %c0_4] : memref<1x32xf32, #tpu.memory_space<vmem>>, vector<1x32xf32>
    %c0_5 = arith.constant 0 : index
    %c0_6 = arith.constant 0 : index
    %5 = vector.load %arg5[%c0_5, %c0_6] : memref<1x32xf32, #tpu.memory_space<vmem>>, vector<1x32xf32>
    %6 = tpu.iota {dimensions = array<i32: 1>} : vector<6x8xi32>
    %c4_i32 = arith.constant 4 : i32
    %7 = vector.broadcast %c4_i32 : i32 to vector<6x8xi32>
    %8 = arith.cmpi sge, %6, %7 : vector<6x8xi32>
    %9 = arith.extui %8 : vector<6x8xi1> to vector<6x8xi32>
    %10 = arith.sitofp %9 : vector<6x8xi32> to vector<6x8xf32>
    %c0_7 = arith.constant 0 : index
    %c0_8 = arith.constant 0 : index
    %c0_9 = arith.constant 0 : index
    %11 = vector.load %arg0[%c0_7, %c0_8, %c0_9] : memref<2x8x32xf32, #tpu.memory_space<vmem>>, vector<1x8x32xf32>
    %12 = vector.shape_cast %11 : vector<1x8x32xf32> to vector<8x32xf32>
    %c0_10 = arith.constant 0 : index
    %c0_11 = arith.constant 0 : index
    %c0_12 = arith.constant 0 : index
    %13 = vector.load %arg1[%c0_10, %c0_11, %c0_12] : memref<2x6x32xf32, #tpu.memory_space<vmem>>, vector<1x6x32xf32>
    %14 = vector.shape_cast %13 : vector<1x6x32xf32> to vector<6x32xf32>
    %15 = arith.truncf %12 : vector<8x32xf32> to vector<8x32xbf16>
    %cst = arith.constant dense<0.000000e+00> : vector<8x32xf32>
    %16 = tpu.matmul %15, %1, %cst {dimension_numbers = #tpu.dot_dimension_numbers<[1], [0], [0], [1], [0, 0, 1, 1], [], []>} : vector<8x32xbf16>, vector<32x32xbf16>, vector<8x32xf32> -> vector<8x32xf32>
    %17 = vector.broadcast %4 : vector<1x32xf32> to vector<8x32xf32>
    %18 = arith.addf %16, %17 : vector<8x32xf32>
    %19 = arith.truncf %14 : vector<6x32xf32> to vector<6x32xbf16>
    %cst_13 = arith.constant dense<0.000000e+00> : vector<6x32xf32>
    %20 = tpu.matmul %19, %3, %cst_13 {dimension_numbers = #tpu.dot_dimension_numbers<[1], [0], [0], [1], [0, 0, 1, 1], [], []>} : vector<6x32xbf16>, vector<32x32xbf16>, vector<6x32xf32> -> vector<6x32xf32>
    %21 = vector.broadcast %5 : vector<1x32xf32> to vector<6x32xf32>
    %22 = arith.addf %20, %21 : vector<6x32xf32>
    %23 = arith.mulf %22, %22 : vector<6x32xf32>
    %cst_14 = arith.constant dense<0.000000e+00> : vector<6xf32>
    %24 = vector.multi_reduction <add>, %23, %cst_14 [1] : vector<6x32xf32> to vector<6xf32>
    %25 = vector.shape_cast %24 : vector<6xf32> to vector<6x1xf32>
    %cst_15 = arith.constant 9.99999996E-13 : f32
    %26 = vector.broadcast %cst_15 : f32 to vector<6x1xf32>
    %27 = arith.addf %25, %26 : vector<6x1xf32>
    %28 = math.rsqrt %27 : vector<6x1xf32>
    %29 = vector.broadcast %28 : vector<6x1xf32> to vector<6x32xf32>
    %30 = arith.mulf %22, %29 : vector<6x32xf32>
    %31 = arith.truncf %30 : vector<6x32xf32> to vector<6x32xbf16>
    %32 = arith.mulf %18, %18 : vector<8x32xf32>
    %cst_16 = arith.constant dense<0.000000e+00> : vector<8xf32>
    %33 = vector.multi_reduction <add>, %32, %cst_16 [1] : vector<8x32xf32> to vector<8xf32>
    %34 = vector.shape_cast %33 : vector<8xf32> to vector<8x1xf32>
    %cst_17 = arith.constant 9.99999996E-13 : f32
    %35 = vector.broadcast %cst_17 : f32 to vector<8x1xf32>
    %36 = arith.addf %34, %35 : vector<8x1xf32>
    %37 = math.rsqrt %36 : vector<8x1xf32>
    %38 = vector.broadcast %37 : vector<8x1xf32> to vector<8x32xf32>
    %39 = arith.mulf %18, %38 : vector<8x32xf32>
    %40 = arith.truncf %39 : vector<8x32xf32> to vector<8x32xbf16>
    "tpu.trace_start"() <{level = 10 : i32, message = "qd,kd->qk"}> : () -> ()
    %cst_18 = arith.constant dense<0.000000e+00> : vector<6x8xf32>
    %41 = tpu.matmul %31, %40, %cst_18 {dimension_numbers = #tpu.dot_dimension_numbers<[1], [1], [0], [0], [0, 0, 1, 0], [], []>} : vector<6x32xbf16>, vector<8x32xbf16>, vector<6x8xf32> -> vector<6x8xf32>
    "tpu.trace_stop"() : () -> ()
    %cst_19 = arith.constant dense<0xFF800000> : vector<6xf32>
    %42 = vector.multi_reduction <maximumf>, %41, %cst_19 [1] : vector<6x8xf32> to vector<6xf32>
    %43 = vector.shape_cast %42 : vector<6xf32> to vector<6x1xf32>
    %44 = vector.broadcast %43 : vector<6x1xf32> to vector<6x8xf32>
    %45 = arith.subf %41, %44 : vector<6x8xf32>
    %46 = math.exp %45 : vector<6x8xf32>
    %cst_20 = arith.constant dense<0.000000e+00> : vector<6xf32>
    %47 = vector.multi_reduction <add>, %46, %cst_20 [1] : vector<6x8xf32> to vector<6xf32>
    %48 = vector.shape_cast %47 : vector<6xf32> to vector<6x1xf32>
    %49 = tpu.reciprocal %48 {approx = true} : vector<6x1xf32> -> vector<6x1xf32>
    %50 = vector.broadcast %49 : vector<6x1xf32> to vector<6x8xf32>
    %51 = arith.mulf %46, %50 : vector<6x8xf32>
    %52 = arith.mulf %51, %10 : vector<6x8xf32>
    %cst_21 = arith.constant dense<0.000000e+00> : vector<6xf32>
    %53 = vector.multi_reduction <add>, %52, %cst_21 [1] : vector<6x8xf32> to vector<6xf32>
    %54 = vector.shape_cast %53 : vector<6xf32> to vector<6x1xf32>
    %c0_22 = arith.constant 0 : index
    %c0_23 = arith.constant 0 : index
    %c0_24 = arith.constant 0 : index
    %55 = vector.load %arg7[%c0_22, %c0_23, %c0_24] : memref<2x6x1xf32, #tpu.memory_space<vmem>>, vector<1x6x1xf32>
    %56 = vector.shape_cast %55 : vector<1x6x1xf32> to vector<6x1xf32>
    %57 = vector.shape_cast %54 : vector<6x1xf32> to vector<1x6x1xf32>
    tpu.vector_store %arg7[%c0_22, %c0_23, %c0_24], %57 {strides = array<i32>} : memref<2x6x1xf32, #tpu.memory_space<vmem>>, vector<1x6x1xf32>,
    %c0_25 = arith.constant 0 : index
    %c0_26 = arith.constant 0 : index
    %c0_27 = arith.constant 0 : index
    %58 = vector.load %arg6[%c0_25, %c0_26, %c0_27] : memref<2x14x32xf32, #tpu.memory_space<vmem>>, vector<1x8x32xf32>
    %59 = vector.shape_cast %58 : vector<1x8x32xf32> to vector<8x32xf32>
    %60 = vector.shape_cast %18 : vector<8x32xf32> to vector<1x8x32xf32>
    tpu.vector_store %arg6[%c0_25, %c0_26, %c0_27], %60 {strides = array<i32>} : memref<2x14x32xf32, #tpu.memory_space<vmem>>, vector<1x8x32xf32>,
    %c0_28 = arith.constant 0 : index
    %c8 = arith.constant 8 : index
    %c0_29 = arith.constant 0 : index
    %61 = vector.load %arg6[%c0_28, %c8, %c0_29] : memref<2x14x32xf32, #tpu.memory_space<vmem>>, vector<1x6x32xf32>
    %62 = vector.shape_cast %61 : vector<1x6x32xf32> to vector<6x32xf32>
    %63 = vector.shape_cast %22 : vector<6x32xf32> to vector<1x6x32xf32>
    tpu.vector_store %arg6[%c0_28, %c8, %c0_29], %63 {strides = array<i32>} : memref<2x14x32xf32, #tpu.memory_space<vmem>>, vector<1x6x32xf32>,
    %c1 = arith.constant 1 : index
    %c0_30 = arith.constant 0 : index
    %c0_31 = arith.constant 0 : index
    %64 = vector.load %arg0[%c1, %c0_30, %c0_31] : memref<2x8x32xf32, #tpu.memory_space<vmem>>, vector<1x8x32xf32>
    %65 = vector.shape_cast %64 : vector<1x8x32xf32> to vector<8x32xf32>
    %c1_32 = arith.constant 1 : index
    %c0_33 = arith.constant 0 : index
    %c0_34 = arith.constant 0 : index
    %66 = vector.load %arg1[%c1_32, %c0_33, %c0_34] : memref<2x6x32xf32, #tpu.memory_space<vmem>>, vector<1x6x32xf32>
    %67 = vector.shape_cast %66 : vector<1x6x32xf32> to vector<6x32xf32>
    %68 = arith.truncf %65 : vector<8x32xf32> to vector<8x32xbf16>
    %cst_35 = arith.constant dense<0.000000e+00> : vector<8x32xf32>
    %69 = tpu.matmul %68, %1, %cst_35 {dimension_numbers = #tpu.dot_dimension_numbers<[1], [0], [0], [1], [0, 0, 1, 1], [], []>} : vector<8x32xbf16>, vector<32x32xbf16>, vector<8x32xf32> -> vector<8x32xf32>
    %70 = vector.broadcast %4 : vector<1x32xf32> to vector<8x32xf32>
    %71 = arith.addf %69, %70 : vector<8x32xf32>
    %72 = arith.truncf %67 : vector<6x32xf32> to vector<6x32xbf16>
    %cst_36 = arith.constant dense<0.000000e+00> : vector<6x32xf32>
    %73 = tpu.matmul %72, %3, %cst_36 {dimension_numbers = #tpu.dot_dimension_numbers<[1], [0], [0], [1], [0, 0, 1, 1], [], []>} : vector<6x32xbf16>, vector<32x32xbf16>, vector<6x32xf32> -> vector<6x32xf32>
    %74 = vector.broadcast %5 : vector<1x32xf32> to vector<6x32xf32>
    %75 = arith.addf %73, %74 : vector<6x32xf32>
    %76 = arith.mulf %75, %75 : vector<6x32xf32>
    %cst_37 = arith.constant dense<0.000000e+00> : vector<6xf32>
    %77 = vector.multi_reduction <add>, %76, %cst_37 [1] : vector<6x32xf32> to vector<6xf32>
    %78 = vector.shape_cast %77 : vector<6xf32> to vector<6x1xf32>
    %cst_38 = arith.constant 9.99999996E-13 : f32
    %79 = vector.broadcast %cst_38 : f32 to vector<6x1xf32>
    %80 = arith.addf %78, %79 : vector<6x1xf32>
    %81 = math.rsqrt %80 : vector<6x1xf32>
    %82 = vector.broadcast %81 : vector<6x1xf32> to vector<6x32xf32>
    %83 = arith.mulf %75, %82 : vector<6x32xf32>
    %84 = arith.truncf %83 : vector<6x32xf32> to vector<6x32xbf16>
    %85 = arith.mulf %71, %71 : vector<8x32xf32>
    %cst_39 = arith.constant dense<0.000000e+00> : vector<8xf32>
    %86 = vector.multi_reduction <add>, %85, %cst_39 [1] : vector<8x32xf32> to vector<8xf32>
    %87 = vector.shape_cast %86 : vector<8xf32> to vector<8x1xf32>
    %cst_40 = arith.constant 9.99999996E-13 : f32
    %88 = vector.broadcast %cst_40 : f32 to vector<8x1xf32>
    %89 = arith.addf %87, %88 : vector<8x1xf32>
    %90 = math.rsqrt %89 : vector<8x1xf32>
    %91 = vector.broadcast %90 : vector<8x1xf32> to vector<8x32xf32>
    %92 = arith.mulf %71, %91 : vector<8x32xf32>
    %93 = arith.truncf %92 : vector<8x32xf32> to vector<8x32xbf16>
    "tpu.trace_start"() <{level = 10 : i32, message = "qd,kd->qk"}> : () -> ()
    %cst_41 = arith.constant dense<0.000000e+00> : vector<6x8xf32>
    %94 = tpu.matmul %84, %93, %cst_41 {dimension_numbers = #tpu.dot_dimension_numbers<[1], [1], [0], [0], [0, 0, 1, 0], [], []>} : vector<6x32xbf16>, vector<8x32xbf16>, vector<6x8xf32> -> vector<6x8xf32>
    "tpu.trace_stop"() : () -> ()
    %cst_42 = arith.constant dense<0xFF800000> : vector<6xf32>
    %95 = vector.multi_reduction <maximumf>, %94, %cst_42 [1] : vector<6x8xf32> to vector<6xf32>
    %96 = vector.shape_cast %95 : vector<6xf32> to vector<6x1xf32>
    %97 = vector.broadcast %96 : vector<6x1xf32> to vector<6x8xf32>
    %98 = arith.subf %94, %97 : vector<6x8xf32>
    %99 = math.exp %98 : vector<6x8xf32>
    %cst_43 = arith.constant dense<0.000000e+00> : vector<6xf32>
    %100 = vector.multi_reduction <add>, %99, %cst_43 [1] : vector<6x8xf32> to vector<6xf32>
    %101 = vector.shape_cast %100 : vector<6xf32> to vector<6x1xf32>
    %102 = tpu.reciprocal %101 {approx = true} : vector<6x1xf32> -> vector<6x1xf32>
    %103 = vector.broadcast %102 : vector<6x1xf32> to vector<6x8xf32>
    %104 = arith.mulf %99, %103 : vector<6x8xf32>
    %105 = arith.mulf %104, %10 : vector<6x8xf32>
    %cst_44 = arith.constant dense<0.000000e+00> : vector<6xf32>
    %106 = vector.multi_reduction <add>, %105, %cst_44 [1] : vector<6x8xf32> to vector<6xf32>
    %107 = vector.shape_cast %106 : vector<6xf32> to vector<6x1xf32>
    %c1_45 = arith.constant 1 : index
    %c0_46 = arith.constant 0 : index
    %c0_47 = arith.constant 0 : index
    %108 = vector.load %arg7[%c1_45, %c0_46, %c0_47] : memref<2x6x1xf32, #tpu.memory_space<vmem>>, vector<1x6x1xf32>
    %109 = vector.shape_cast %108 : vector<1x6x1xf32> to vector<6x1xf32>
    %110 = vector.shape_cast %107 : vector<6x1xf32> to vector<1x6x1xf32>
    tpu.vector_store %arg7[%c1_45, %c0_46, %c0_47], %110 {strides = array<i32>} : memref<2x6x1xf32, #tpu.memory_space<vmem>>, vector<1x6x1xf32>,
    %c1_48 = arith.constant 1 : index
    %c0_49 = arith.constant 0 : index
    %c0_50 = arith.constant 0 : index
    %111 = vector.load %arg6[%c1_48, %c0_49, %c0_50] : memref<2x14x32xf32, #tpu.memory_space<vmem>>, vector<1x8x32xf32>
    %112 = vector.shape_cast %111 : vector<1x8x32xf32> to vector<8x32xf32>
    %113 = vector.shape_cast %71 : vector<8x32xf32> to vector<1x8x32xf32>
    tpu.vector_store %arg6[%c1_48, %c0_49, %c0_50], %113 {strides = array<i32>} : memref<2x14x32xf32, #tpu.memory_space<vmem>>, vector<1x8x32xf32>,
    %c1_51 = arith.constant 1 : index
    %c8_52 = arith.constant 8 : index
    %c0_53 = arith.constant 0 : index
    %114 = vector.load %arg6[%c1_51, %c8_52, %c0_53] : memref<2x14x32xf32, #tpu.memory_space<vmem>>, vector<1x6x32xf32>
    %115 = vector.shape_cast %114 : vector<1x6x32xf32> to vector<6x32xf32>
    %116 = vector.shape_cast %75 : vector<6x32xf32> to vector<1x6x32xf32>
    tpu.vector_store %arg6[%c1_51, %c8_52, %c0_53], %116 {strides = array<i32>} : memref<2x14x32xf32, #tpu.memory_space<vmem>>, vector<1x6x32xf32>,
    return
  }
}

module attributes {stable_mosaic.version = 11 : i64} {
  func.func @_stage2_kernel(%arg0: memref<2x8x32xf32, #tpu.memory_space<vmem>>, %arg1: memref<2x5x32xf32, #tpu.memory_space<vmem>>, %arg2: memref<2x5x32xf32, #tpu.memory_space<vmem>>, %arg3: memref<2x8x32xf32, #tpu.memory_space<vmem>>, %arg4: memref<2x5x32xf32, #tpu.memory_space<vmem>>, %arg5: memref<2x5x32xf32, #tpu.memory_space<vmem>>) attributes {dimension_semantics = [], scalar_prefetch = 0 : i64, scratch_operands = 0 : i64, tpu.core_type = #tpu.core_type<tc>} {
    %c0 = arith.constant 0 : index
    %c0_0 = arith.constant 0 : index
    %c0_1 = arith.constant 0 : index
    %0 = vector.load %arg0[%c0, %c0_0, %c0_1] : memref<2x8x32xf32, #tpu.memory_space<vmem>>, vector<2x8x32xf32>
    %1 = arith.mulf %0, %0 : vector<2x8x32xf32>
    %cst = arith.constant dense<0.000000e+00> : vector<2x8xf32>
    %2 = vector.multi_reduction <add>, %1, %cst [2] : vector<2x8x32xf32> to vector<2x8xf32>
    %3 = vector.shape_cast %2 : vector<2x8xf32> to vector<2x8x1xf32>
    %cst_2 = arith.constant 9.99999996E-13 : f32
    %4 = vector.broadcast %cst_2 : f32 to vector<2x8x1xf32>
    %5 = arith.addf %3, %4 : vector<2x8x1xf32>
    %6 = math.rsqrt %5 : vector<2x8x1xf32>
    %7 = vector.broadcast %6 : vector<2x8x1xf32> to vector<2x8x32xf32>
    %8 = arith.mulf %0, %7 : vector<2x8x32xf32>
    %9 = arith.truncf %8 : vector<2x8x32xf32> to vector<2x8x32xbf16>
    "tpu.trace_start"() <{level = 10 : i32, message = "bqd,bkd->bqk"}> : () -> ()
    %cst_3 = arith.constant dense<0.000000e+00> : vector<2x8x8xf32>
    %10 = tpu.matmul %9, %9, %cst_3 {dimension_numbers = #tpu.dot_dimension_numbers<[2], [2], [1], [1], [0, 0, 0, 1, 1, 1], [0], [0]>} : vector<2x8x32xbf16>, vector<2x8x32xbf16>, vector<2x8x8xf32> -> vector<2x8x8xf32>
    "tpu.trace_stop"() : () -> ()
    %cst_4 = arith.constant dense<0xFF800000> : vector<2x8xf32>
    %11 = vector.multi_reduction <maximumf>, %10, %cst_4 [2] : vector<2x8x8xf32> to vector<2x8xf32>
    %12 = vector.shape_cast %11 : vector<2x8xf32> to vector<2x8x1xf32>
    %13 = vector.broadcast %12 : vector<2x8x1xf32> to vector<2x8x8xf32>
    %14 = arith.subf %10, %13 : vector<2x8x8xf32>
    %15 = math.exp %14 : vector<2x8x8xf32>
    %cst_5 = arith.constant dense<0.000000e+00> : vector<2x8xf32>
    %16 = vector.multi_reduction <add>, %15, %cst_5 [2] : vector<2x8x8xf32> to vector<2x8xf32>
    %17 = vector.shape_cast %16 : vector<2x8xf32> to vector<2x8x1xf32>
    %18 = tpu.reciprocal %17 {approx = true} : vector<2x8x1xf32> -> vector<2x8x1xf32>
    %19 = vector.broadcast %18 : vector<2x8x1xf32> to vector<2x8x8xf32>
    %20 = arith.mulf %15, %19 : vector<2x8x8xf32>
    %21 = arith.truncf %20 : vector<2x8x8xf32> to vector<2x8x8xbf16>
    %22 = arith.truncf %0 : vector<2x8x32xf32> to vector<2x8x32xbf16>
    "tpu.trace_start"() <{level = 10 : i32, message = "bqk,bkd->bqd"}> : () -> ()
    %cst_6 = arith.constant dense<0.000000e+00> : vector<2x8x32xf32>
    %23 = tpu.matmul %21, %22, %cst_6 {dimension_numbers = #tpu.dot_dimension_numbers<[2], [1], [1], [2], [0, 0, 0, 1, 1, 2], [0], [0]>} : vector<2x8x8xbf16>, vector<2x8x32xbf16>, vector<2x8x32xf32> -> vector<2x8x32xf32>
    "tpu.trace_stop"() : () -> ()
    %c0_7 = arith.constant 0 : index
    %c0_8 = arith.constant 0 : index
    %c0_9 = arith.constant 0 : index
    %24 = vector.load %arg3[%c0_7, %c0_8, %c0_9] : memref<2x8x32xf32, #tpu.memory_space<vmem>>, vector<2x8x32xf32>
    tpu.vector_store %arg3[%c0_7, %c0_8, %c0_9], %23 {strides = array<i32>} : memref<2x8x32xf32, #tpu.memory_space<vmem>>, vector<2x8x32xf32>,
    %c0_10 = arith.constant 0 : index
    %c0_11 = arith.constant 0 : index
    %c0_12 = arith.constant 0 : index
    %25 = vector.load %arg1[%c0_10, %c0_11, %c0_12] : memref<2x5x32xf32, #tpu.memory_space<vmem>>, vector<2x5x32xf32>
    %26 = arith.mulf %25, %25 : vector<2x5x32xf32>
    %cst_13 = arith.constant dense<0.000000e+00> : vector<2x5xf32>
    %27 = vector.multi_reduction <add>, %26, %cst_13 [2] : vector<2x5x32xf32> to vector<2x5xf32>
    %28 = vector.shape_cast %27 : vector<2x5xf32> to vector<2x5x1xf32>
    %cst_14 = arith.constant 9.99999996E-13 : f32
    %29 = vector.broadcast %cst_14 : f32 to vector<2x5x1xf32>
    %30 = arith.addf %28, %29 : vector<2x5x1xf32>
    %31 = math.rsqrt %30 : vector<2x5x1xf32>
    %32 = vector.broadcast %31 : vector<2x5x1xf32> to vector<2x5x32xf32>
    %33 = arith.mulf %25, %32 : vector<2x5x32xf32>
    %34 = arith.truncf %33 : vector<2x5x32xf32> to vector<2x5x32xbf16>
    "tpu.trace_start"() <{level = 10 : i32, message = "bqd,bkd->bqk"}> : () -> ()
    %cst_15 = arith.constant dense<0.000000e+00> : vector<2x5x5xf32>
    %35 = tpu.matmul %34, %34, %cst_15 {dimension_numbers = #tpu.dot_dimension_numbers<[2], [2], [1], [1], [0, 0, 0, 1, 1, 1], [0], [0]>} : vector<2x5x32xbf16>, vector<2x5x32xbf16>, vector<2x5x5xf32> -> vector<2x5x5xf32>
    "tpu.trace_stop"() : () -> ()
    %cst_16 = arith.constant dense<0xFF800000> : vector<2x5xf32>
    %36 = vector.multi_reduction <maximumf>, %35, %cst_16 [2] : vector<2x5x5xf32> to vector<2x5xf32>
    %37 = vector.shape_cast %36 : vector<2x5xf32> to vector<2x5x1xf32>
    %38 = vector.broadcast %37 : vector<2x5x1xf32> to vector<2x5x5xf32>
    %39 = arith.subf %35, %38 : vector<2x5x5xf32>
    %40 = math.exp %39 : vector<2x5x5xf32>
    %cst_17 = arith.constant dense<0.000000e+00> : vector<2x5xf32>
    %41 = vector.multi_reduction <add>, %40, %cst_17 [2] : vector<2x5x5xf32> to vector<2x5xf32>
    %42 = vector.shape_cast %41 : vector<2x5xf32> to vector<2x5x1xf32>
    %43 = tpu.reciprocal %42 {approx = true} : vector<2x5x1xf32> -> vector<2x5x1xf32>
    %44 = vector.broadcast %43 : vector<2x5x1xf32> to vector<2x5x5xf32>
    %45 = arith.mulf %40, %44 : vector<2x5x5xf32>
    %46 = arith.truncf %45 : vector<2x5x5xf32> to vector<2x5x5xbf16>
    %47 = arith.truncf %25 : vector<2x5x32xf32> to vector<2x5x32xbf16>
    "tpu.trace_start"() <{level = 10 : i32, message = "bqk,bkd->bqd"}> : () -> ()
    %cst_18 = arith.constant dense<0.000000e+00> : vector<2x5x32xf32>
    %48 = tpu.matmul %46, %47, %cst_18 {dimension_numbers = #tpu.dot_dimension_numbers<[2], [1], [1], [2], [0, 0, 0, 1, 1, 2], [0], [0]>} : vector<2x5x5xbf16>, vector<2x5x32xbf16>, vector<2x5x32xf32> -> vector<2x5x32xf32>
    "tpu.trace_stop"() : () -> ()
    %c0_19 = arith.constant 0 : index
    %c0_20 = arith.constant 0 : index
    %c0_21 = arith.constant 0 : index
    %49 = vector.load %arg4[%c0_19, %c0_20, %c0_21] : memref<2x5x32xf32, #tpu.memory_space<vmem>>, vector<2x5x32xf32>
    tpu.vector_store %arg4[%c0_19, %c0_20, %c0_21], %48 {strides = array<i32>} : memref<2x5x32xf32, #tpu.memory_space<vmem>>, vector<2x5x32xf32>,
    %c0_22 = arith.constant 0 : index
    %c0_23 = arith.constant 0 : index
    %c0_24 = arith.constant 0 : index
    %50 = vector.load %arg2[%c0_22, %c0_23, %c0_24] : memref<2x5x32xf32, #tpu.memory_space<vmem>>, vector<2x5x32xf32>
    %51 = arith.mulf %50, %50 : vector<2x5x32xf32>
    %cst_25 = arith.constant dense<0.000000e+00> : vector<2x5xf32>
    %52 = vector.multi_reduction <add>, %51, %cst_25 [2] : vector<2x5x32xf32> to vector<2x5xf32>
    %53 = vector.shape_cast %52 : vector<2x5xf32> to vector<2x5x1xf32>
    %cst_26 = arith.constant 9.99999996E-13 : f32
    %54 = vector.broadcast %cst_26 : f32 to vector<2x5x1xf32>
    %55 = arith.addf %53, %54 : vector<2x5x1xf32>
    %56 = math.rsqrt %55 : vector<2x5x1xf32>
    %57 = vector.broadcast %56 : vector<2x5x1xf32> to vector<2x5x32xf32>
    %58 = arith.mulf %50, %57 : vector<2x5x32xf32>
    %59 = arith.truncf %58 : vector<2x5x32xf32> to vector<2x5x32xbf16>
    "tpu.trace_start"() <{level = 10 : i32, message = "bqd,bkd->bqk"}> : () -> ()
    %cst_27 = arith.constant dense<0.000000e+00> : vector<2x5x5xf32>
    %60 = tpu.matmul %59, %59, %cst_27 {dimension_numbers = #tpu.dot_dimension_numbers<[2], [2], [1], [1], [0, 0, 0, 1, 1, 1], [0], [0]>} : vector<2x5x32xbf16>, vector<2x5x32xbf16>, vector<2x5x5xf32> -> vector<2x5x5xf32>
    "tpu.trace_stop"() : () -> ()
    %cst_28 = arith.constant dense<0xFF800000> : vector<2x5xf32>
    %61 = vector.multi_reduction <maximumf>, %60, %cst_28 [2] : vector<2x5x5xf32> to vector<2x5xf32>
    %62 = vector.shape_cast %61 : vector<2x5xf32> to vector<2x5x1xf32>
    %63 = vector.broadcast %62 : vector<2x5x1xf32> to vector<2x5x5xf32>
    %64 = arith.subf %60, %63 : vector<2x5x5xf32>
    %65 = math.exp %64 : vector<2x5x5xf32>
    %cst_29 = arith.constant dense<0.000000e+00> : vector<2x5xf32>
    %66 = vector.multi_reduction <add>, %65, %cst_29 [2] : vector<2x5x5xf32> to vector<2x5xf32>
    %67 = vector.shape_cast %66 : vector<2x5xf32> to vector<2x5x1xf32>
    %68 = tpu.reciprocal %67 {approx = true} : vector<2x5x1xf32> -> vector<2x5x1xf32>
    %69 = vector.broadcast %68 : vector<2x5x1xf32> to vector<2x5x5xf32>
    %70 = arith.mulf %65, %69 : vector<2x5x5xf32>
    %71 = arith.truncf %70 : vector<2x5x5xf32> to vector<2x5x5xbf16>
    %72 = arith.truncf %50 : vector<2x5x32xf32> to vector<2x5x32xbf16>
    "tpu.trace_start"() <{level = 10 : i32, message = "bqk,bkd->bqd"}> : () -> ()
    %cst_30 = arith.constant dense<0.000000e+00> : vector<2x5x32xf32>
    %73 = tpu.matmul %71, %72, %cst_30 {dimension_numbers = #tpu.dot_dimension_numbers<[2], [1], [1], [2], [0, 0, 0, 1, 1, 2], [0], [0]>} : vector<2x5x5xbf16>, vector<2x5x32xbf16>, vector<2x5x32xf32> -> vector<2x5x32xf32>
    "tpu.trace_stop"() : () -> ()
    %c0_31 = arith.constant 0 : index
    %c0_32 = arith.constant 0 : index
    %c0_33 = arith.constant 0 : index
    %74 = vector.load %arg5[%c0_31, %c0_32, %c0_33] : memref<2x5x32xf32, #tpu.memory_space<vmem>>, vector<2x5x32xf32>
    tpu.vector_store %arg5[%c0_31, %c0_32, %c0_33], %73 {strides = array<i32>} : memref<2x5x32xf32, #tpu.memory_space<vmem>>, vector<2x5x32xf32>,
    return
  }
}

</mosaic_0001>

<llo_original>
// kernel: neg.2
$region0: #{neg.2}
  #allocation0 [shape = 's32[1]{0}', space=sflag, size = 0x4, scoped, tag = 'scoped memory for neg.2']
  %s0 = inlined_call_operand.vmem [shape: f32[2,6], index: 0, kind: input, shape index: {}]
  %s1 = inlined_call_operand.vmem [shape: f32[2,6], index: 1, kind: output, shape index: {}]
  %v2 = vld [vmem:[%s0] sm:$0x3f]
  %3 = xla_tuple %v2
  %4 = xla_tuple %3
  %v5 = vxor.u32 %v2, 2147483648
  %6 = xla_tuple %v5
  %7 = vst [vmem:[%s1] sm:$0xff] %v5

// kernel: lpn_forward.2
$region0: #{lpn_forward.2}
  #allocation0 [shape = 'u32[]', space=smem, size = 0x4, offset = 0x4, fixed_abs, tag = 'smem constant byte address 0x4 - core index']
  #allocation1 [shape = 'u32[72,128]{1,0:T(1,128)}', space=vmem, size = 0x9000, scoped, tag = 'internal scratch']
  %s0 = inlined_call_operand.vmem [shape: f32[2,8,32], index: 0, kind: input, shape index: {}]
  %s1 = inlined_call_operand.vmem [shape: f32[2,6,32], index: 1, kind: input, shape index: {}]
  %s2 = inlined_call_operand.vmem [shape: f32[32,32], index: 2, kind: input, shape index: {}]
  %s3 = inlined_call_operand.vmem [shape: f32[1,32], index: 3, kind: input, shape index: {}]
  %s4 = inlined_call_operand.hbm [shape: f32[32,32], index: 4, kind: input, shape index: {}]
  %s5 = inlined_call_operand.vmem [shape: f32[1,32], index: 5, kind: input, shape index: {}]
  %s6 = inlined_call_operand.vmem [shape: f32[2,14,32], index: 6, kind: output, shape index: {0}]
  %s7 = inlined_call_operand.vmem [shape: f32[2,6,1], index: 7, kind: output, shape index: {1}]
  %8 = xla_tuple %s6, %s7
  %s9 = sld [smem:[#allocation0]]
  $region46: #{lpn_forward.2} parent=0
    _
  %s11 = ssub.s32 1, %s9
  %s12 = scalar_select 0, %s11, %s9
  $region1: #{lpn_forward.2} parent=0
    #allocation2 [shape = 'u8[16384]{0}', space=vmem, size = 0x4000, scoped, tag = 'input window, operand 4, single buffered']
    #allocation3 [shape = 's32[1]{0}', space=sflag, size = 0x4, scoped, tag = 'scoped memory for lpn_forward.2']
    %13 = vsyncpa [#allocation3], 0
    // Predicated region
    $region2: #{lpn_forward.2} parent=1 // pred_check
      _
    $region3: #{lpn_forward.2} parent=1 // pred_check_branch
      %15 = sbr.rel (0) target = $region5
    $region4: #{lpn_forward.2} parent=1 // pred_region
      _
    $region5: #{lpn_forward.2} parent=1 // pred_fallthru
      _
    // Predicated region
    $region6: #{lpn_forward.2} parent=1 // pred_check
      _
    $region7: #{lpn_forward.2} parent=1 // pred_check_branch
      %17 = sbr.rel (0) target = $region9
    $region8: #{lpn_forward.2} parent=1 // pred_region
      _
    $region9: #{lpn_forward.2} parent=1 // pred_fallthru
      _
    // Predicated region
    $region10: #{lpn_forward.2} parent=1 // pred_check
      _
    $region11: #{lpn_forward.2} parent=1 // pred_check_branch
      %19 = sbr.rel (0) target = $region13
    $region12: #{lpn_forward.2} parent=1 // pred_region
      _
    $region13: #{lpn_forward.2} parent=1 // pred_fallthru
      _
    // Predicated region
    $region14: #{lpn_forward.2} parent=1 // pred_check
      _
    $region15: #{lpn_forward.2} parent=1 // pred_check_branch
      %21 = sbr.rel (0) target = $region17
    $region16: #{lpn_forward.2} parent=1 // pred_region
      _
    $region17: #{lpn_forward.2} parent=1 // pred_fallthru
      _
    // Predicated region
    $region18: #{lpn_forward.2} parent=1 // pred_check
      _
    $region19: #{lpn_forward.2} parent=1 // pred_check_branch
      %23 = sbr.rel (0) target = $region21
    $region20: #{lpn_forward.2} parent=1 // pred_region
      %25 = vsyncadd [#allocation3], 0
      %s26 = sshll.u32 %s4, 4
      %s27 = int_to_ptr.hbm [resolvable:$true] %s26
      %s28 = sshll.u32 [#allocation2], 4
      %s29 = int_to_ptr.vmem [resolvable:$true] %s28
      %34 = dma.hbm_to_vmem [thread:$0]  %s27, 512, %s29, [#allocation3], 128, 128, 8
    $region21: #{lpn_forward.2} parent=1 // pred_fallthru
      _
    // Predicated region
    $region22: #{lpn_forward.2} parent=1 // pred_check
      _
    $region23: #{lpn_forward.2} parent=1 // pred_check_branch
      %36 = sbr.rel (0) target = $region25
    $region24: #{lpn_forward.2} parent=1 // pred_region
      _
    $region25: #{lpn_forward.2} parent=1 // pred_fallthru
      _
    // Predicated region
    $region26: #{lpn_forward.2} parent=1 // pred_check
      _
    $region27: #{lpn_forward.2} parent=1 // pred_check_branch
      %38 = sbr.rel (0) target = $region29
    $region28: #{lpn_forward.2} parent=1 // pred_region
      %40 = dma.done [#allocation3], 512
    $region29: #{lpn_forward.2} parent=1 // pred_fallthru
      _
    %v42 = vld [vmem:[%s2] sm:$0xff]
    %v43 = vld [vmem:[%s2 + $0x8] sm:$0xff]
    %v44 = vld [vmem:[%s2 + $0x10] sm:$0xff]
    %v45 = vld [vmem:[%s2 + $0x18] sm:$0xff]
    %v46 = vpack.c.bf16 %v43, %v42
    %v47 = vpack.c.bf16 %v45, %v44
    %v48 = vld [vmem:[#allocation2] sm:$0xff]
    %v49 = vld [vmem:[#allocation2 + $0x8] sm:$0xff]
    %v50 = vld [vmem:[#allocation2 + $0x10] sm:$0xff]
    %v51 = vld [vmem:[#allocation2 + $0x18] sm:$0xff]
    %v52 = vpack.c.bf16 %v49, %v48
    %v53 = vpack.c.bf16 %v51, %v50
    %v54 = vld [vmem:[%s3] sm:$0x1]
    %v55 = vld [vmem:[%s5] sm:$0x1]
    %v56 = vlaneseq
    %v57 = vand.u32 %v56, 127
    %vm58 = vcmp.ge.s32.totalorder %v57, 4
    %v59 = vsel %vm58, 1, 0
    %v60 = vcvt.s32.f32 %v59
    %v61 = vld [vmem:[%s0] sm:$0xff]
    %v62 = vld [vmem:[%s1] sm:$0x3f]
    %v63 = vpack.c.bf16 %v61, %v61
    %v65 = vperm.slane %v54, 0
    %vm67 = vcmask 261120
    %v69 = vsel %vm67, %v63, 0
    %71 = vmatpush.bf16.msra.mxu0 0
    %72 = vmatpush.bf16.msra.mxu0 0
    %73 = vmatpush.bf16.msra.mxu0 0
    %74 = vmatpush.bf16.msra.mxu0 0
    %75 = vmatpush.bf16.msra.mxu0 0
    %76 = vmatpush.bf16.msra.mxu0 0
    %77 = vmatpush.bf16.msra.mxu0 %v47
    %78 = vmatpush.bf16.msra.mxu0 %v46
    %79 = vmatmul.bf16.gmra.mxu0 %v69
    %v80 = vpop.f32.mrf.mxu0
    %v81 = vadd.f32 %v65, %v80
    %v82 = vpop.f32.mrf.mxu0
    %83 = vdwg.mxu0
    %v84 = vpack.c.bf16 %v62, %v62
    %v86 = vperm.slane %v55, 0
    %v89 = vsel %vm67, %v84, 0
    %91 = vmatpush.bf16.msra.mxu0 0
    %92 = vmatpush.bf16.msra.mxu0 0
    %93 = vmatpush.bf16.msra.mxu0 0
    %94 = vmatpush.bf16.msra.mxu0 0
    %95 = vmatpush.bf16.msra.mxu0 0
    %96 = vmatpush.bf16.msra.mxu0 0
    %97 = vmatpush.bf16.msra.mxu0 %v53
    %98 = vmatpush.bf16.msra.mxu0 %v52
    %99 = vmatmul.bf16.gmra.mxu0 %v89
    %v100 = vpop.f32.mrf.mxu0
    %v101 = vadd.f32 %v86, %v100
    %v102 = vpop.f32.mrf.mxu0
    %103 = vdwg.mxu0
    %v104 = vmul.f32 %v101, %v101
    %vm105 = vcmask 259072
    %v106 = vsel %vm105, %v104, 0.0
    %107 = vadd.xlane.f32.xlu0 %v106
    %v108 = vpop.xlane.xlu0 %107
    %v109 = vadd.f32 %v108, 1e-12
    %v110 = vrsqrt.pop %v109
    %v111 = vmul.f32 %v110, %v109
    %v112 = vmul.f32 %v111, %v110
    %v113 = vmul.f32 0.5, %v112
    %v114 = vsub.f32 1.5, %v113
    %v115 = vmul.f32 %v110, %v114
    %vm116 = vweird.f32 %v109
    %vm117 = vweird.f32 %v110
    %vm118 = vmor %vm116, %vm117
    %v119 = vsel %vm118, %v110, %v115
    %v120 = vmul.f32 %v101, %v119
    %v121 = vpack.c.bf16 %v120, %v120
    %v122 = vmul.f32 %v81, %v81
    %v123 = vsel %vm67, %v122, 0.0
    %124 = vadd.xlane.f32.xlu0 %v123
    %v125 = vpop.xlane.xlu0 %124
    %v126 = vadd.f32 %v125, 1e-12
    %v127 = vrsqrt.pop %v126
    %v128 = vmul.f32 %v127, %v126
    %v129 = vmul.f32 %v128, %v127
    %v130 = vmul.f32 0.5, %v129
    %v131 = vsub.f32 1.5, %v130
    %v132 = vmul.f32 %v127, %v131
    %vm133 = vweird.f32 %v126
    %vm134 = vweird.f32 %v127
    %vm135 = vmor %vm133, %vm134
    %v136 = vsel %vm135, %v127, %v132
    %v137 = vmul.f32 %v81, %v136
    %v138 = vpack.c.bf16 %v137, %v137
    %v140 = vsel %vm67, %v121, 0
    %v143 = vsel %vm67, %v138, 0
    %145 = vmatpush.bf16.xpose.msra.mxu0 0
    %146 = vmatpush.bf16.xpose.msra.mxu0 0
    %147 = vmatpush.bf16.xpose.msra.mxu0 0
    %148 = vmatpush.bf16.xpose.msra.mxu0 0
    %149 = vmatpush.bf16.xpose.msra.mxu0 0
    %150 = vmatpush.bf16.xpose.msra.mxu0 0
    %151 = vmatpush.bf16.xpose.msra.mxu0 0
    %152 = vmatpush.bf16.xpose.msra.mxu0 %v143
    %153 = vmatmul.bf16.gmra.mxu0 %v140
    %v154 = vpop.f32.mrf.mxu0
    %v155 = vadd.f32 0.0, %v154
    %v156 = vpop.f32.mrf.mxu0
    %157 = vdwg.mxu0
    %vm158 = vcmask 62464
    %v159 = vsel %vm158, %v155, -inf
    %160 = vmax.xlane.f32.xlu0 %v159
    %v161 = vpop.xlane.xlu0 %160
    %v162 = vsub.f32 %v155, %v161
    %v163 = vmul.f32 %v162, 1.442695
    %v164 = vpow.pop %v163
    %v165 = vsel %vm158, %v164, 0.0
    %166 = vadd.xlane.f32.xlu0 %v165
    %v167 = vpop.xlane.xlu0 %166
    %v168 = vrcp.pop %v167
    %v169 = vmul.f32 %v164, %v168
    %v170 = vmul.f32 %v169, %v60
    %v171 = vsel %vm158, %v170, 0.0
    %172 = vadd.xlane.f32.xlu0 %v171
    %v173 = vpop.xlane.xlu0 %172
    %vm174 = vcmask 5120
    %175 = vst.msk [vmem:[%s7] sm:$0x3f] %vm174, %v173
    %176 = vst.msk [vmem:[%s6] sm:$0xff] %vm67, %v81
    %177 = vst.msk [vmem:[%s6 + $0x8] sm:$0x3f] %vm105, %v101
    %s178 = scalar_lea.vmem %s0, 8
    %v179 = vld [vmem:[%s178] sm:$0xff]
    %s180 = scalar_lea.vmem %s1, 8
    %v181 = vld [vmem:[%s180] sm:$0x3f]
    %v182 = vpack.c.bf16 %v179, %v179
    %v184 = vsel %vm67, %v182, 0
    %186 = vmatpush.bf16.msra.mxu0 0
    %187 = vmatpush.bf16.msra.mxu0 0
    %188 = vmatpush.bf16.msra.mxu0 0
    %189 = vmatpush.bf16.msra.mxu0 0
    %190 = vmatpush.bf16.msra.mxu0 0
    %191 = vmatpush.bf16.msra.mxu0 0
    %192 = vmatpush.bf16.msra.mxu0 %v47
    %193 = vmatpush.bf16.msra.mxu0 %v46
    %194 = vmatmul.bf16.gmra.mxu0 %v184
    %v195 = vpop.f32.mrf.mxu0
    %v196 = vadd.f32 %v65, %v195
    %v197 = vpop.f32.mrf.mxu0
    %198 = vdwg.mxu0
    %v199 = vpack.c.bf16 %v181, %v181
    %v201 = vsel %vm67, %v199, 0
    %203 = vmatpush.bf16.msra.mxu0 0
    %204 = vmatpush.bf16.msra.mxu0 0
    %205 = vmatpush.bf16.msra.mxu0 0
    %206 = vmatpush.bf16.msra.mxu0 0
    %207 = vmatpush.bf16.msra.mxu0 0
    %208 = vmatpush.bf16.msra.mxu0 0
    %209 = vmatpush.bf16.msra.mxu0 %v53
    %210 = vmatpush.bf16.msra.mxu0 %v52
    %211 = vmatmul.bf16.gmra.mxu0 %v201
    %v212 = vpop.f32.mrf.mxu0
    %v213 = vadd.f32 %v86, %v212
    %v214 = vpop.f32.mrf.mxu0
    %215 = vdwg.mxu0
    %v216 = vmul.f32 %v213, %v213
    %v217 = vsel %vm105, %v216, 0.0
    %218 = vadd.xlane.f32.xlu0 %v217
    %v219 = vpop.xlane.xlu0 %218
    %v220 = vadd.f32 %v219, 1e-12
    %v221 = vrsqrt.pop %v220
    %v222 = vmul.f32 %v221, %v220
    %v223 = vmul.f32 %v222, %v221
    %v224 = vmul.f32 0.5, %v223
    %v225 = vsub.f32 1.5, %v224
    %v226 = vmul.f32 %v221, %v225
    %vm227 = vweird.f32 %v220
    %vm228 = vweird.f32 %v221
    %vm229 = vmor %vm227, %vm228
    %v230 = vsel %vm229, %v221, %v226
    %v231 = vmul.f32 %v213, %v230
    %v232 = vpack.c.bf16 %v231, %v231
    %v233 = vmul.f32 %v196, %v196
    %v234 = vsel %vm67, %v233, 0.0
    %235 = vadd.xlane.f32.xlu0 %v234
    %v236 = vpop.xlane.xlu0 %235
    %v237 = vadd.f32 %v236, 1e-12
    %v238 = vrsqrt.pop %v237
    %v239 = vmul.f32 %v238, %v237
    %v240 = vmul.f32 %v239, %v238
    %v241 = vmul.f32 0.5, %v240
    %v242 = vsub.f32 1.5, %v241
    %v243 = vmul.f32 %v238, %v242
    %vm244 = vweird.f32 %v237
    %vm245 = vweird.f32 %v238
    %vm246 = vmor %vm244, %vm245
    %v247 = vsel %vm246, %v238, %v243
    %v248 = vmul.f32 %v196, %v247
    %v249 = vpack.c.bf16 %v248, %v248
    %v251 = vsel %vm67, %v232, 0
    %v254 = vsel %vm67, %v249, 0
    %256 = vmatpush.bf16.xpose.msra.mxu0 0
    %257 = vmatpush.bf16.xpose.msra.mxu0 0
    %258 = vmatpush.bf16.xpose.msra.mxu0 0
    %259 = vmatpush.bf16.xpose.msra.mxu0 0
    %260 = vmatpush.bf16.xpose.msra.mxu0 0
    %261 = vmatpush.bf16.xpose.msra.mxu0 0
    %262 = vmatpush.bf16.xpose.msra.mxu0 0
    %263 = vmatpush.bf16.xpose.msra.mxu0 %v254
    %264 = vmatmul.bf16.gmra.mxu0 %v251
    %v265 = vpop.f32.mrf.mxu0
    %v266 = vadd.f32 0.0, %v265
    %v267 = vpop.f32.mrf.mxu0
    %268 = vdwg.mxu0
    %v269 = vsel %vm158, %v266, -inf
    %270 = vmax.xlane.f32.xlu0 %v269
    %v271 = vpop.xlane.xlu0 %270
    %v272 = vsub.f32 %v266, %v271
    %v273 = vmul.f32 %v272, 1.442695
    %v274 = vpow.pop %v273
    %v275 = vsel %vm158, %v274, 0.0
    %276 = vadd.xlane.f32.xlu0 %v275
    %v277 = vpop.xlane.xlu0 %276
    %v278 = vrcp.pop %v277
    %v279 = vmul.f32 %v274, %v278
    %v280 = vmul.f32 %v279, %v60
    %v281 = vsel %vm158, %v280, 0.0
    %282 = vadd.xlane.f32.xlu0 %v281
    %v283 = vpop.xlane.xlu0 %282
    %s284 = scalar_lea.vmem %s7, 8
    %285 = vst.msk [vmem:[%s284] sm:$0x3f] %vm174, %v283
    %s286 = scalar_lea.vmem %s6, 16
    %287 = vst.msk [vmem:[%s286] sm:$0xff] %vm67, %v196
    %288 = vst.msk [vmem:[%s286 + $0x8] sm:$0x3f] %vm105, %v213
    // Predicated region
    $region30: #{lpn_forward.2} parent=1 // pred_check
      _
    $region31: #{lpn_forward.2} parent=1 // pred_check_branch
      %290 = sbr.rel (0) target = $region33
    $region32: #{lpn_forward.2} parent=1 // pred_region
      _
    $region33: #{lpn_forward.2} parent=1 // pred_fallthru
      _
    // Predicated region
    $region34: #{lpn_forward.2} parent=1 // pred_check
      _
    $region35: #{lpn_forward.2} parent=1 // pred_check_branch
      %292 = sbr.rel (0) target = $region37
    $region36: #{lpn_forward.2} parent=1 // pred_region
      _
    $region37: #{lpn_forward.2} parent=1 // pred_fallthru
      _
    // Predicated region
    $region38: #{lpn_forward.2} parent=1 // pred_check
      _
    $region39: #{lpn_forward.2} parent=1 // pred_check_branch
      %294 = sbr.rel (0) target = $region41
    $region40: #{lpn_forward.2} parent=1 // pred_region
      _
    $region41: #{lpn_forward.2} parent=1 // pred_fallthru
      _
    // Predicated region
    $region42: #{lpn_forward.2} parent=1 // pred_check
      _
    $region43: #{lpn_forward.2} parent=1 // pred_check_branch
      %296 = sbr.rel (0) target = $region45
    $region44: #{lpn_forward.2} parent=1 // pred_region
      _
    $region45: #{lpn_forward.2} parent=1 // pred_fallthru
      _
    %297 = vsyncpa [#allocation3], 1

// kernel: lpn_forward.3
$region0: #{lpn_forward.3}
  #allocation0 [shape = 'u32[]', space=smem, size = 0x4, offset = 0x4, fixed_abs, tag = 'smem constant byte address 0x4 - core index']
  #allocation1 [shape = 'u32[72,128]{1,0:T(1,128)}', space=vmem, size = 0x9000, scoped, tag = 'internal scratch']
  %s0 = inlined_call_operand.vmem [shape: f32[2,8,32], index: 0, kind: input, shape index: {}]
  %s1 = inlined_call_operand.vmem [shape: f32[2,5,32], index: 1, kind: input, shape index: {}]
  %s2 = inlined_call_operand.vmem [shape: f32[2,5,32], index: 2, kind: input, shape index: {}]
  %s3 = inlined_call_operand.hbm [shape: f32[2,8,32], index: 3, kind: output, shape index: {0}]
  %s4 = inlined_call_operand.vmem [shape: f32[2,5,32], index: 4, kind: output, shape index: {1}]
  %s5 = inlined_call_operand.vmem [shape: f32[2,5,32], index: 5, kind: output, shape index: {2}]
  %6 = xla_tuple %s3, %s4, %s5
  %s7 = sld [smem:[#allocation0]]
  $region38: #{lpn_forward.3} parent=0
    _
  %s9 = ssub.s32 1, %s7
  %s10 = scalar_select 0, %s9, %s7
  $region1: #{lpn_forward.3} parent=0
    #allocation2 [shape = 'u8[8192]{0}', space=vmem, size = 0x2000, scoped, tag = 'output window, operand 0, single buffered']
    #allocation3 [shape = 's32[1]{0}', space=sflag, size = 0x4, scoped, tag = 'scoped memory for lpn_forward.3']
    %11 = vsyncpa [#allocation3], 0
    // Predicated region
    $region2: #{lpn_forward.3} parent=1 // pred_check
      _
    $region3: #{lpn_forward.3} parent=1 // pred_check_branch
      %13 = sbr.rel (0) target = $region5
    $region4: #{lpn_forward.3} parent=1 // pred_region
      _
    $region5: #{lpn_forward.3} parent=1 // pred_fallthru
      _
    // Predicated region
    $region6: #{lpn_forward.3} parent=1 // pred_check
      _
    $region7: #{lpn_forward.3} parent=1 // pred_check_branch
      %15 = sbr.rel (0) target = $region9
    $region8: #{lpn_forward.3} parent=1 // pred_region
      _
    $region9: #{lpn_forward.3} parent=1 // pred_fallthru
      _
    // Predicated region
    $region10: #{lpn_forward.3} parent=1 // pred_check
      _
    $region11: #{lpn_forward.3} parent=1 // pred_check_branch
      %17 = sbr.rel (0) target = $region13
    $region12: #{lpn_forward.3} parent=1 // pred_region
      _
    $region13: #{lpn_forward.3} parent=1 // pred_fallthru
      _
    %v19 = vld [vmem:[%s0] sm:$0xff]
    %v20 = vld [vmem:[%s0 + $0x8] sm:$0xff]
    %v21 = vmul.f32 %v19, %v19
    %v22 = vmul.f32 %v20, %v20
    %vm23 = vcmask 261120
    %v24 = vsel %vm23, %v21, 0.0
    %25 = vadd.xlane.f32.xlu0 %v24
    %v26 = vpop.xlane.xlu0 %25
    %v27 = vsel %vm23, %v22, 0.0
    %28 = vadd.xlane.f32.xlu0 %v27
    %v29 = vpop.xlane.xlu0 %28
    %v30 = vadd.f32 %v26, 1e-12
    %v31 = vadd.f32 %v29, 1e-12
    %v32 = vrsqrt.pop %v30
    %v33 = vmul.f32 %v32, %v30
    %v34 = vmul.f32 %v33, %v32
    %v35 = vmul.f32 0.5, %v34
    %v36 = vsub.f32 1.5, %v35
    %v37 = vmul.f32 %v32, %v36
    %vm38 = vweird.f32 %v30
    %vm39 = vweird.f32 %v32
    %vm40 = vmor %vm38, %vm39
    %v41 = vsel %vm40, %v32, %v37
    %v42 = vrsqrt.pop %v31
    %v43 = vmul.f32 %v42, %v31
    %v44 = vmul.f32 %v43, %v42
    %v45 = vmul.f32 0.5, %v44
    %v46 = vsub.f32 1.5, %v45
    %v47 = vmul.f32 %v42, %v46
    %vm48 = vweird.f32 %v31
    %vm49 = vweird.f32 %v42
    %vm50 = vmor %vm48, %vm49
    %v51 = vsel %vm50, %v42, %v47
    %v52 = vmul.f32 %v19, %v41
    %v53 = vmul.f32 %v20, %v51
    %v54 = vpack.c.bf16 %v52, %v52
    %v55 = vpack.c.bf16 %v53, %v53
    %v57 = vsel %vm23, %v54, 0
    %59 = vmatpush.bf16.xpose.msra.mxu0 0
    %60 = vmatpush.bf16.xpose.msra.mxu0 0
    %61 = vmatpush.bf16.xpose.msra.mxu0 0
    %62 = vmatpush.bf16.xpose.msra.mxu0 0
    %63 = vmatpush.bf16.xpose.msra.mxu0 0
    %64 = vmatpush.bf16.xpose.msra.mxu0 0
    %65 = vmatpush.bf16.xpose.msra.mxu0 0
    %66 = vmatpush.bf16.xpose.msra.mxu0 %v57
    %67 = vmatmul.bf16.gmra.mxu0 %v57
    %v68 = vpop.f32.mrf.mxu0
    %v69 = vadd.f32 0.0, %v68
    %v70 = vpop.f32.mrf.mxu0
    %71 = vdwg.mxu0
    %v73 = vsel %vm23, %v55, 0
    %75 = vmatpush.bf16.xpose.msra.mxu0 0
    %76 = vmatpush.bf16.xpose.msra.mxu0 0
    %77 = vmatpush.bf16.xpose.msra.mxu0 0
    %78 = vmatpush.bf16.xpose.msra.mxu0 0
    %79 = vmatpush.bf16.xpose.msra.mxu0 0
    %80 = vmatpush.bf16.xpose.msra.mxu0 0
    %81 = vmatpush.bf16.xpose.msra.mxu0 0
    %82 = vmatpush.bf16.xpose.msra.mxu0 %v73
    %83 = vmatmul.bf16.gmra.mxu0 %v73
    %v84 = vpop.f32.mrf.mxu0
    %v85 = vadd.f32 0.0, %v84
    %v86 = vpop.f32.mrf.mxu0
    %87 = vdwg.mxu0
    %vm88 = vcmask 64512
    %v89 = vsel %vm88, %v69, -inf
    %90 = vmax.xlane.f32.xlu0 %v89
    %v91 = vpop.xlane.xlu0 %90
    %v92 = vsel %vm88, %v85, -inf
    %93 = vmax.xlane.f32.xlu0 %v92
    %v94 = vpop.xlane.xlu0 %93
    %v95 = vsub.f32 %v69, %v91
    %v96 = vsub.f32 %v85, %v94
    %v97 = vmul.f32 %v95, 1.442695
    %v98 = vpow.pop %v97
    %v99 = vmul.f32 %v96, 1.442695
    %v100 = vpow.pop %v99
    %v101 = vsel %vm88, %v98, 0.0
    %102 = vadd.xlane.f32.xlu0 %v101
    %v103 = vpop.xlane.xlu0 %102
    %v104 = vsel %vm88, %v100, 0.0
    %105 = vadd.xlane.f32.xlu0 %v104
    %v106 = vpop.xlane.xlu0 %105
    %v107 = vrcp.pop %v103
    %v108 = vrcp.pop %v106
    %v109 = vmul.f32 %v98, %v107
    %v110 = vmul.f32 %v100, %v108
    %v111 = vpack.c.bf16 %v109, %v109
    %v112 = vpack.c.bf16 %v110, %v110
    %v113 = vpack.c.bf16 %v19, %v19
    %v114 = vpack.c.bf16 %v20, %v20
    %v116 = vsel %vm88, %v111, 0
    %vm118 = vcmask 1043456
    %v120 = vsel %vm118, %v113, 0
    %122 = vmatpush.bf16.msra.mxu0 0
    %123 = vmatpush.bf16.msra.mxu0 0
    %124 = vmatpush.bf16.msra.mxu0 0
    %125 = vmatpush.bf16.msra.mxu0 0
    %126 = vmatpush.bf16.msra.mxu0 0
    %127 = vmatpush.bf16.msra.mxu0 0
    %128 = vmatpush.bf16.msra.mxu0 0
    %129 = vmatpush.bf16.msra.mxu0 %v120
    %130 = vmatmul.bf16.gmra.mxu0 %v116
    %v131 = vpop.f32.mrf.mxu0
    %v132 = vadd.f32 0.0, %v131
    %v133 = vpop.f32.mrf.mxu0
    %134 = vdwg.mxu0
    %v136 = vsel %vm88, %v112, 0
    %v139 = vsel %vm118, %v114, 0
    %141 = vmatpush.bf16.msra.mxu0 0
    %142 = vmatpush.bf16.msra.mxu0 0
    %143 = vmatpush.bf16.msra.mxu0 0
    %144 = vmatpush.bf16.msra.mxu0 0
    %145 = vmatpush.bf16.msra.mxu0 0
    %146 = vmatpush.bf16.msra.mxu0 0
    %147 = vmatpush.bf16.msra.mxu0 0
    %148 = vmatpush.bf16.msra.mxu0 %v139
    %149 = vmatmul.bf16.gmra.mxu0 %v136
    %v150 = vpop.f32.mrf.mxu0
    %v151 = vadd.f32 0.0, %v150
    %v152 = vpop.f32.mrf.mxu0
    %153 = vdwg.mxu0
    %154 = vst.msk [vmem:[#allocation2] sm:$0xff] %vm23, %v132
    %155 = vst.msk [vmem:[#allocation2 + $0x8] sm:$0xff] %vm23, %v151
    %v156 = vld [vmem:[%s1] sm:$0x1f]
    %v157 = vld [vmem:[%s1 + $0x8] sm:$0x1f]
    %v158 = vmul.f32 %v156, %v156
    %v159 = vmul.f32 %v157, %v157
    %vm160 = vcmask 258048
    %v161 = vsel %vm160, %v158, 0.0
    %162 = vadd.xlane.f32.xlu0 %v161
    %v163 = vpop.xlane.xlu0 %162
    %v164 = vsel %vm160, %v159, 0.0
    %165 = vadd.xlane.f32.xlu0 %v164
    %v166 = vpop.xlane.xlu0 %165
    %v167 = vadd.f32 %v163, 1e-12
    %v168 = vadd.f32 %v166, 1e-12
    %v169 = vrsqrt.pop %v167
    %v170 = vmul.f32 %v169, %v167
    %v171 = vmul.f32 %v170, %v169
    %v172 = vmul.f32 0.5, %v171
    %v173 = vsub.f32 1.5, %v172
    %v174 = vmul.f32 %v169, %v173
    %vm175 = vweird.f32 %v167
    %vm176 = vweird.f32 %v169
    %vm177 = vmor %vm175, %vm176
    %v178 = vsel %vm177, %v169, %v174
    %v179 = vrsqrt.pop %v168
    %v180 = vmul.f32 %v179, %v168
    %v181 = vmul.f32 %v180, %v179
    %v182 = vmul.f32 0.5, %v181
    %v183 = vsub.f32 1.5, %v182
    %v184 = vmul.f32 %v179, %v183
    %vm185 = vweird.f32 %v168
    %vm186 = vweird.f32 %v179
    %vm187 = vmor %vm185, %vm186
    %v188 = vsel %vm187, %v179, %v184
    %v189 = vmul.f32 %v156, %v178
    %v190 = vmul.f32 %v157, %v188
    %v191 = vpack.c.bf16 %v189, %v189
    %v192 = vpack.c.bf16 %v190, %v190
    %v194 = vsel %vm23, %v191, 0
    %196 = vmatpush.bf16.xpose.msra.mxu0 0
    %197 = vmatpush.bf16.xpose.msra.mxu0 0
    %198 = vmatpush.bf16.xpose.msra.mxu0 0
    %199 = vmatpush.bf16.xpose.msra.mxu0 0
    %200 = vmatpush.bf16.xpose.msra.mxu0 0
    %201 = vmatpush.bf16.xpose.msra.mxu0 0
    %202 = vmatpush.bf16.xpose.msra.mxu0 0
    %203 = vmatpush.bf16.xpose.msra.mxu0 %v194
    %204 = vmatmul.bf16.gmra.mxu0 %v194
    %v205 = vpop.f32.mrf.mxu0
    %v206 = vadd.f32 0.0, %v205
    %v207 = vpop.f32.mrf.mxu0
    %208 = vdwg.mxu0
    %v210 = vsel %vm23, %v192, 0
    %212 = vmatpush.bf16.xpose.msra.mxu0 0
    %213 = vmatpush.bf16.xpose.msra.mxu0 0
    %214 = vmatpush.bf16.xpose.msra.mxu0 0
    %215 = vmatpush.bf16.xpose.msra.mxu0 0
    %216 = vmatpush.bf16.xpose.msra.mxu0 0
    %217 = vmatpush.bf16.xpose.msra.mxu0 0
    %218 = vmatpush.bf16.xpose.msra.mxu0 0
    %219 = vmatpush.bf16.xpose.msra.mxu0 %v210
    %220 = vmatmul.bf16.gmra.mxu0 %v210
    %v221 = vpop.f32.mrf.mxu0
    %v222 = vadd.f32 0.0, %v221
    %v223 = vpop.f32.mrf.mxu0
    %224 = vdwg.mxu0
    %vm225 = vcmask 36864
    %v226 = vsel %vm225, %v206, -inf
    %227 = vmax.xlane.f32.xlu0 %v226
    %v228 = vpop.xlane.xlu0 %227
    %v229 = vsel %vm225, %v222, -inf
    %230 = vmax.xlane.f32.xlu0 %v229
    %v231 = vpop.xlane.xlu0 %230
    %v232 = vsub.f32 %v206, %v228
    %v233 = vsub.f32 %v222, %v231
    %v234 = vmul.f32 %v232, 1.442695
    %v235 = vpow.pop %v234
    %v236 = vmul.f32 %v233, 1.442695
    %v237 = vpow.pop %v236
    %v238 = vsel %vm225, %v235, 0.0
    %239 = vadd.xlane.f32.xlu0 %v238
    %v240 = vpop.xlane.xlu0 %239
    %v241 = vsel %vm225, %v237, 0.0
    %242 = vadd.xlane.f32.xlu0 %v241
    %v243 = vpop.xlane.xlu0 %242
    %v244 = vrcp.pop %v240
    %v245 = vrcp.pop %v243
    %v246 = vmul.f32 %v235, %v244
    %v247 = vmul.f32 %v237, %v245
    %v248 = vpack.c.bf16 %v246, %v246
    %v249 = vpack.c.bf16 %v247, %v247
    %v250 = vpack.c.bf16 %v156, %v156
    %v251 = vpack.c.bf16 %v157, %v157
    %vm252 = vcmask 39936
    %v254 = vsel %vm252, %v248, 0
    %vm256 = vcmask 1041408
    %vm257 = vcmask 1042432
    %v258 = vsel %vm256, 4294967295, 65535
    %v259 = vsel %vm257, %v258, 0
    %v261 = vand.u32 %v250, %v259
    %263 = vmatpush.bf16.msra.mxu0 0
    %264 = vmatpush.bf16.msra.mxu0 0
    %265 = vmatpush.bf16.msra.mxu0 0
    %266 = vmatpush.bf16.msra.mxu0 0
    %267 = vmatpush.bf16.msra.mxu0 0
    %268 = vmatpush.bf16.msra.mxu0 0
    %269 = vmatpush.bf16.msra.mxu0 0
    %270 = vmatpush.bf16.msra.mxu0 %v261
    %271 = vmatmul.bf16.gmra.mxu0 %v254
    %v272 = vpop.f32.mrf.mxu0
    %v273 = vadd.f32 0.0, %v272
    %v274 = vpop.f32.mrf.mxu0
    %275 = vdwg.mxu0
    %v277 = vsel %vm252, %v249, 0
    %v280 = vand.u32 %v251, %v259
    %282 = vmatpush.bf16.msra.mxu0 0
    %283 = vmatpush.bf16.msra.mxu0 0
    %284 = vmatpush.bf16.msra.mxu0 0
    %285 = vmatpush.bf16.msra.mxu0 0
    %286 = vmatpush.bf16.msra.mxu0 0
    %287 = vmatpush.bf16.msra.mxu0 0
    %288 = vmatpush.bf16.msra.mxu0 0
    %289 = vmatpush.bf16.msra.mxu0 %v280
    %290 = vmatmul.bf16.gmra.mxu0 %v277
    %v291 = vpop.f32.mrf.mxu0
    %v292 = vadd.f32 0.0, %v291
    %v293 = vpop.f32.mrf.mxu0
    %294 = vdwg.mxu0
    %295 = vst.msk [vmem:[%s4] sm:$0x1f] %vm160, %v273
    %296 = vst.msk [vmem:[%s4 + $0x8] sm:$0x1f] %vm160, %v292
    %v297 = vld [vmem:[%s2] sm:$0x1f]
    %v298 = vld [vmem:[%s2 + $0x8] sm:$0x1f]
    %v299 = vmul.f32 %v297, %v297
    %v300 = vmul.f32 %v298, %v298
    %v301 = vsel %vm160, %v299, 0.0
    %302 = vadd.xlane.f32.xlu0 %v301
    %v303 = vpop.xlane.xlu0 %302
    %v304 = vsel %vm160, %v300, 0.0
    %305 = vadd.xlane.f32.xlu0 %v304
    %v306 = vpop.xlane.xlu0 %305
    %v307 = vadd.f32 %v303, 1e-12
    %v308 = vadd.f32 %v306, 1e-12
    %v309 = vrsqrt.pop %v307
    %v310 = vmul.f32 %v309, %v307
    %v311 = vmul.f32 %v310, %v309
    %v312 = vmul.f32 0.5, %v311
    %v313 = vsub.f32 1.5, %v312
    %v314 = vmul.f32 %v309, %v313
    %vm315 = vweird.f32 %v307
    %vm316 = vweird.f32 %v309
    %vm317 = vmor %vm315, %vm316
    %v318 = vsel %vm317, %v309, %v314
    %v319 = vrsqrt.pop %v308
    %v320 = vmul.f32 %v319, %v308
    %v321 = vmul.f32 %v320, %v319
    %v322 = vmul.f32 0.5, %v321
    %v323 = vsub.f32 1.5, %v322
    %v324 = vmul.f32 %v319, %v323
    %vm325 = vweird.f32 %v308
    %vm326 = vweird.f32 %v319
    %vm327 = vmor %vm325, %vm326
    %v328 = vsel %vm327, %v319, %v324
    %v329 = vmul.f32 %v297, %v318
    %v330 = vmul.f32 %v298, %v328
    %v331 = vpack.c.bf16 %v329, %v329
    %v332 = vpack.c.bf16 %v330, %v330
    %v334 = vsel %vm23, %v331, 0
    %336 = vmatpush.bf16.xpose.msra.mxu0 0
    %337 = vmatpush.bf16.xpose.msra.mxu0 0
    %338 = vmatpush.bf16.xpose.msra.mxu0 0
    %339 = vmatpush.bf16.xpose.msra.mxu0 0
    %340 = vmatpush.bf16.xpose.msra.mxu0 0
    %341 = vmatpush.bf16.xpose.msra.mxu0 0
    %342 = vmatpush.bf16.xpose.msra.mxu0 0
    %343 = vmatpush.bf16.xpose.msra.mxu0 %v334
    %344 = vmatmul.bf16.gmra.mxu0 %v334
    %v345 = vpop.f32.mrf.mxu0
    %v346 = vadd.f32 0.0, %v345
    %v347 = vpop.f32.mrf.mxu0
    %348 = vdwg.mxu0
    %v350 = vsel %vm23, %v332, 0
    %352 = vmatpush.bf16.xpose.msra.mxu0 0
    %353 = vmatpush.bf16.xpose.msra.mxu0 0
    %354 = vmatpush.bf16.xpose.msra.mxu0 0
    %355 = vmatpush.bf16.xpose.msra.mxu0 0
    %356 = vmatpush.bf16.xpose.msra.mxu0 0
    %357 = vmatpush.bf16.xpose.msra.mxu0 0
    %358 = vmatpush.bf16.xpose.msra.mxu0 0
    %359 = vmatpush.bf16.xpose.msra.mxu0 %v350
    %360 = vmatmul.bf16.gmra.mxu0 %v350
    %v361 = vpop.f32.mrf.mxu0
    %v362 = vadd.f32 0.0, %v361
    %v363 = vpop.f32.mrf.mxu0
    %364 = vdwg.mxu0
    %v365 = vsel %vm225, %v346, -inf
    %366 = vmax.xlane.f32.xlu0 %v365
    %v367 = vpop.xlane.xlu0 %366
    %v368 = vsel %vm225, %v362, -inf
    %369 = vmax.xlane.f32.xlu0 %v368
    %v370 = vpop.xlane.xlu0 %369
    %v371 = vsub.f32 %v346, %v367
    %v372 = vsub.f32 %v362, %v370
    %v373 = vmul.f32 %v371, 1.442695
    %v374 = vpow.pop %v373
    %v375 = vmul.f32 %v372, 1.442695
    %v376 = vpow.pop %v375
    %v377 = vsel %vm225, %v374, 0.0
    %378 = vadd.xlane.f32.xlu0 %v377
    %v379 = vpop.xlane.xlu0 %378
    %v380 = vsel %vm225, %v376, 0.0
    %381 = vadd.xlane.f32.xlu0 %v380
    %v382 = vpop.xlane.xlu0 %381
    %v383 = vrcp.pop %v379
    %v384 = vrcp.pop %v382
    %v385 = vmul.f32 %v374, %v383
    %v386 = vmul.f32 %v376, %v384
    %v387 = vpack.c.bf16 %v385, %v385
    %v388 = vpack.c.bf16 %v386, %v386
    %v389 = vpack.c.bf16 %v297, %v297
    %v390 = vpack.c.bf16 %v298, %v298
    %v392 = vsel %vm252, %v387, 0
    %v395 = vand.u32 %v389, %v259
    %397 = vmatpush.bf16.msra.mxu0 0
    %398 = vmatpush.bf16.msra.mxu0 0
    %399 = vmatpush.bf16.msra.mxu0 0
    %400 = vmatpush.bf16.msra.mxu0 0
    %401 = vmatpush.bf16.msra.mxu0 0
    %402 = vmatpush.bf16.msra.mxu0 0
    %403 = vmatpush.bf16.msra.mxu0 0
    %404 = vmatpush.bf16.msra.mxu0 %v395
    %405 = vmatmul.bf16.gmra.mxu0 %v392
    %v406 = vpop.f32.mrf.mxu0
    %v407 = vadd.f32 0.0, %v406
    %v408 = vpop.f32.mrf.mxu0
    %409 = vdwg.mxu0
    %v411 = vsel %vm252, %v388, 0
    %v414 = vand.u32 %v390, %v259
    %416 = vmatpush.bf16.msra.mxu0 0
    %417 = vmatpush.bf16.msra.mxu0 0
    %418 = vmatpush.bf16.msra.mxu0 0
    %419 = vmatpush.bf16.msra.mxu0 0
    %420 = vmatpush.bf16.msra.mxu0 0
    %421 = vmatpush.bf16.msra.mxu0 0
    %422 = vmatpush.bf16.msra.mxu0 0
    %423 = vmatpush.bf16.msra.mxu0 %v414
    %424 = vmatmul.bf16.gmra.mxu0 %v411
    %v425 = vpop.f32.mrf.mxu0
    %v426 = vadd.f32 0.0, %v425
    %v427 = vpop.f32.mrf.mxu0
    %428 = vdwg.mxu0
    %429 = vst.msk [vmem:[%s5] sm:$0x1f] %vm160, %v407
    %430 = vst.msk [vmem:[%s5 + $0x8] sm:$0x1f] %vm160, %v426
    // Predicated region
    $region14: #{lpn_forward.3} parent=1 // pred_check
      _
    $region15: #{lpn_forward.3} parent=1 // pred_check_branch
      %432 = sbr.rel (0) target = $region17
    $region16: #{lpn_forward.3} parent=1 // pred_region
      %434 = vsyncadd [#allocation3], 0
      %s435 = sshll.u32 [#allocation2], 4
      %s436 = int_to_ptr.vmem [resolvable:$true] %s435
      %s437 = sshll.u32 %s3, 4
      %s438 = int_to_ptr.hbm [resolvable:$true] %s437
      %443 = dma.vmem_to_hbm [thread:$0]  %s436, 256, %s438, [#allocation3], 128, 128, 8
    $region17: #{lpn_forward.3} parent=1 // pred_fallthru
      _
    // Predicated region
    $region18: #{lpn_forward.3} parent=1 // pred_check
      _
    $region19: #{lpn_forward.3} parent=1 // pred_check_branch
      %445 = sbr.rel (0) target = $region21
    $region20: #{lpn_forward.3} parent=1 // pred_region
      _
    $region21: #{lpn_forward.3} parent=1 // pred_fallthru
      _
    // Predicated region
    $region22: #{lpn_forward.3} parent=1 // pred_check
      _
    $region23: #{lpn_forward.3} parent=1 // pred_check_branch
      %447 = sbr.rel (0) target = $region25
    $region24: #{lpn_forward.3} parent=1 // pred_region
      _
    $region25: #{lpn_forward.3} parent=1 // pred_fallthru
      _
    // Predicated region
    $region26: #{lpn_forward.3} parent=1 // pred_check
      _
    $region27: #{lpn_forward.3} parent=1 // pred_check_branch
      %449 = sbr.rel (0) target = $region29
    $region28: #{lpn_forward.3} parent=1 // pred_region
      %451 = dma.done [#allocation3], 256
    $region29: #{lpn_forward.3} parent=1 // pred_fallthru
      _
    // Predicated region
    $region30: #{lpn_forward.3} parent=1 // pred_check
      _
    $region31: #{lpn_forward.3} parent=1 // pred_check_branch
      %453 = sbr.rel (0) target = $region33
    $region32: #{lpn_forward.3} parent=1 // pred_region
      _
    $region33: #{lpn_forward.3} parent=1 // pred_fallthru
      _
    // Predicated region
    $region34: #{lpn_forward.3} parent=1 // pred_check
      _
    $region35: #{lpn_forward.3} parent=1 // pred_check_branch
      %455 = sbr.rel (0) target = $region37
    $region36: #{lpn_forward.3} parent=1 // pred_region
      _
    $region37: #{lpn_forward.3} parent=1 // pred_fallthru
      _
    %456 = vsyncpa [#allocation3], 1

</llo_original>
